<compile_context>
chip_gen: v7x
topology: tpu7x:2x2x1
jax: 0.10.0
libtpu: 0.0.40
codegen_flags: <defaults>
</compile_context>

<pallas_src>
import functools

import jax
import jax.numpy as jnp
from jax.experimental import pallas as pl
from jax.experimental.pallas import tpu as pltpu

BN_EPS = 1e-5


def _bert_head_kernel(x_ref, w_ref, b_ref, o_ref):
    """One grid step computes a (B, TN) slab of the output.

    x_ref : (B, F)   full input block (f32)
    w_ref : (F, TN)  BN-folded Linear weight tile (bf16, F-major)
    b_ref : (1, TN)  BN-folded Linear bias tile (f32)
    o_ref : (B, TN)  output tile (f32)
    """
    x = x_ref[...].astype(jnp.bfloat16)                               # (B, F)
    y = jnp.dot(x, w_ref[...], preferred_element_type=jnp.float32)    # (B, TN)
    y = y + b_ref[...]
    o_ref[...] = jnp.maximum(y, 0.0).astype(o_ref.dtype)


@functools.partial(jax.jit, static_argnames=("tn",))
def bert_head_forward(x, w_fold, b_fold, tn=None):
    """x: (B, F) f32; w_fold: (F, O) bf16; b_fold: (O,) f32. Returns (B, O) f32."""
    B, F = x.shape
    O = w_fold.shape[1]
    if tn is None:
        tn = O                       # single grid step by default
    assert O % tn == 0

    bias2 = b_fold.reshape(1, O)
    grid = (O // tn,)

    return pl.pallas_call(
        _bert_head_kernel,
        out_shape=jax.ShapeDtypeStruct((B, O), jnp.float32),
        grid_spec=pltpu.PrefetchScalarGridSpec(
            num_scalar_prefetch=0,
            grid=grid,
            in_specs=[
                pl.BlockSpec((B, F), lambda j: (0, 0)),    # x (full, resident)
                pl.BlockSpec((F, tn), lambda j: (0, j)),   # folded weight tile
                pl.BlockSpec((1, tn), lambda j: (0, j)),   # folded bias tile
            ],
            out_specs=pl.BlockSpec((B, tn), lambda j: (0, j)),
        ),
        compiler_params=pltpu.CompilerParams(
            dimension_semantics=("parallel",)),
    )(x, w_fold, bias2)


def init_params(bert_hidden_size, key):
    """Deterministic parameter init mirroring BERT_Head.__init__.

    Returns both the raw (unfolded, f32) parameters for the reference and the
    BN-folded bf16 weight / f32 bias used by the kernel.  The fold happens
    here, at init time, so it costs nothing per call.
    """
    in_features = bert_hidden_size * 3
    out_features = 512 * 3

    # BatchNorm1d: weight=1, bias=0, running_mean=0, running_var=1
    gamma = jnp.ones((in_features,), jnp.float32)
    beta = jnp.zeros((in_features,), jnp.float32)
    running_mean = jnp.zeros((in_features,), jnp.float32)
    running_var = jnp.ones((in_features,), jnp.float32)

    # Linear: kaiming_normal_ (fan_in, gain=sqrt(2)), bias=0
    std = (2.0 / in_features) ** 0.5
    w = jax.random.normal(key, (out_features, in_features), jnp.float32) * std
    bias = jnp.zeros((out_features,), jnp.float32)

    # Fold eval-mode BatchNorm into the Linear layer:
    #   BN(x)   = x * scale + shift
    #   y       = BN(x) @ W^T + b = x @ (scale[:,None] * W^T) + (shift @ W^T + b)
    inv_std = jax.lax.rsqrt(running_var + BN_EPS)        # (F,)
    scale = gamma * inv_std                              # (F,)
    shift = beta - running_mean * scale                  # (F,)

    w_t = w.T                                            # (F, O), F-major
    w_fold = (scale[:, None] * w_t).astype(jnp.bfloat16) # (F, O) bf16, contiguous
    b_fold = (bias + shift @ w_t).astype(jnp.float32)    # (O,)

    raw = (gamma, beta, running_mean, running_var, w_t, bias)
    return raw, w_fold, b_fold


def reference_forward(x, gamma, beta, mean, var, w_t, bias):
    """Pure-JAX f32 reference of BN(eval) -> Dropout(eval) -> Linear -> ReLU."""
    xn = (x - mean[None, :]) * jax.lax.rsqrt(var[None, :] + BN_EPS)
    xn = xn * gamma[None, :] + beta[None, :]
    return jnp.maximum(xn @ w_t + bias[None, :], 0.0)


if __name__ == "__main__":
    bert_hidden_size = 32      # small hidden size
    B = 8                      # batch

    key = jax.random.PRNGKey(0)
    k_w, k_x = jax.random.split(key)

    (gamma, beta, r_mean, r_var, w_t, bias), w_fold, b_fold = init_params(
        bert_hidden_size, k_w)

    # "bert_embeddings" arrives as (B, 3, H) and is flattened by .view(B, -1)
    bert_embeddings = jax.random.normal(
        k_x, (B, 3, bert_hidden_size), jnp.float32)
    x = bert_embeddings.reshape(B, -1)   # (B, 96)

    out = bert_head_forward(x, w_fold, b_fold)     # single-step grid
    out = jax.block_until_ready(out)

    ref = reference_forward(x, gamma, beta, r_mean, r_var, w_t, bias)
    assert out.shape == (B, 512 * 3)
    # bf16 weights -> small numeric drift vs. the f32 reference (K=96).
    assert jnp.allclose(out, ref, atol=5e-2, rtol=5e-2)

    # Optional v7x-style 2-way split across TensorCores (still correct everywhere).
    out2 = jax.block_until_ready(bert_head_forward(x, w_fold, b_fold, tn=768))
    assert jnp.allclose(out2, ref, atol=5e-2, rtol=5e-2)

    print("KERNEL_OK")
</pallas_src>

<mosaic_0001>
module attributes {stable_mosaic.version = 11 : i64} {
  func.func @_bert_head_kernel(%arg0: i32, %arg1: memref<8x96xf32, #tpu.memory_space<vmem>>, %arg2: memref<96x1536xbf16, #tpu.memory_space<vmem>>, %arg3: memref<1x1536xf32, #tpu.memory_space<vmem>>, %arg4: memref<8x1536xf32, #tpu.memory_space<vmem>>) attributes {dimension_semantics = [#tpu.dimension_semantics<parallel>], iteration_bounds = array<i64: 1>, scalar_prefetch = 0 : i64, scratch_operands = 0 : i64, tpu.core_type = #tpu.core_type<tc>, window_params = [{pipeline_mode = #tpu.pipeline_mode<synchronous>, transform_indices = @transform_0, window_bounds = array<i64: 8, 96>}, {transform_indices = @transform_1, window_bounds = array<i64: 96, 1536>}, {transform_indices = @transform_2, window_bounds = array<i64: 1, 1536>}, {transform_indices = @transform_3, window_bounds = array<i64: 8, 1536>}]} {
    %c0 = arith.constant 0 : index
    %c0_0 = arith.constant 0 : index
    %0 = vector.load %arg1[%c0, %c0_0] : memref<8x96xf32, #tpu.memory_space<vmem>>, vector<8x96xf32>
    %1 = arith.truncf %0 : vector<8x96xf32> to vector<8x96xbf16>
    %c0_1 = arith.constant 0 : index
    %c0_2 = arith.constant 0 : index
    %2 = vector.load %arg2[%c0_1, %c0_2] : memref<96x1536xbf16, #tpu.memory_space<vmem>>, vector<96x1536xbf16>
    %cst = arith.constant dense<0.000000e+00> : vector<8x1536xf32>
    %3 = tpu.matmul %1, %2, %cst {dimension_numbers = #tpu.dot_dimension_numbers<[1], [0], [0], [1], [0, 0, 1, 1], [], []>} : vector<8x96xbf16>, vector<96x1536xbf16>, vector<8x1536xf32> -> vector<8x1536xf32>
    %c0_3 = arith.constant 0 : index
    %c0_4 = arith.constant 0 : index
    %4 = vector.load %arg3[%c0_3, %c0_4] : memref<1x1536xf32, #tpu.memory_space<vmem>>, vector<1x1536xf32>
    %5 = vector.broadcast %4 : vector<1x1536xf32> to vector<8x1536xf32>
    %6 = arith.addf %3, %5 : vector<8x1536xf32>
    %cst_5 = arith.constant 0.000000e+00 : f32
    %7 = vector.broadcast %cst_5 : f32 to vector<8x1536xf32>
    %8 = arith.maximumf %6, %7 : vector<8x1536xf32>
    %c0_6 = arith.constant 0 : index
    %c0_7 = arith.constant 0 : index
    %9 = vector.load %arg4[%c0_6, %c0_7] : memref<8x1536xf32, #tpu.memory_space<vmem>>, vector<8x1536xf32>
    tpu.vector_store %arg4[%c0_6, %c0_7], %8 {strides = array<i32>} : memref<8x1536xf32, #tpu.memory_space<vmem>>, vector<8x1536xf32>,
    return
  }
  func.func @transform_0(%arg0: i32) -> (i32, i32) {
    %c0_i32 = arith.constant 0 : i32
    %c0_i32_0 = arith.constant 0 : i32
    %c0_i32_1 = arith.constant 0 : i32
    return %c0_i32, %c0_i32_0 : i32, i32
  }
  func.func @transform_1(%arg0: i32) -> (i32, i32) {
    %c0_i32 = arith.constant 0 : i32
    %c0_i32_0 = arith.constant 0 : i32
    return %c0_i32, %arg0 : i32, i32
  }
  func.func @transform_2(%arg0: i32) -> (i32, i32) {
    %c0_i32 = arith.constant 0 : i32
    %c0_i32_0 = arith.constant 0 : i32
    return %c0_i32, %arg0 : i32, i32
  }
  func.func @transform_3(%arg0: i32) -> (i32, i32) {
    %c0_i32 = arith.constant 0 : i32
    %c0_i32_0 = arith.constant 0 : i32
    return %c0_i32, %arg0 : i32, i32
  }
}

</mosaic_0001>

<llo_original>
// kernel: bert_head_forward.1
$region0: #{bert_head_forward.1}
  #allocation0 [shape = 'u32[]', space=smem, size = 0x4, offset = 0x4, fixed_abs, tag = 'smem constant byte address 0x4 - core index']
  #allocation1 [shape = 'u32[144,128]{1,0:T(1,128)}', space=vmem, size = 0x12000, scoped, tag = 'internal scratch']
  %s0 = inlined_call_operand.vmem [shape: f32[8,96], index: 0, kind: input, shape index: {}]
  %s1 = inlined_call_operand.hbm [shape: bf16[96,1536], index: 1, kind: input, shape index: {}]
  %s2 = inlined_call_operand.vmem [shape: f32[1,1536], index: 2, kind: input, shape index: {}]
  %s3 = inlined_call_operand.hbm [shape: f32[8,1536], index: 3, kind: output, shape index: {}]
  %s4 = sld [smem:[#allocation0]]
  $region26: #{bert_head_forward.1} parent=0
    _
  %s6 = ssub.s32 1, %s4
  %s7 = scalar_select 0, %s6, %s4
  $region1: #{bert_head_forward.1} parent=0
    #allocation2 [shape = 'u8[294912]{0}', space=vmem, size = 0x48000, scoped, tag = 'input window, operand 1, single buffered']
    #allocation3 [shape = 's32[1]{0}', space=sflag, size = 0x4, scoped, tag = 'scoped memory for bert_head_forward.1']
    #allocation4 [shape = 's32[1]{0}', space=sflag, size = 0x4, scoped, tag = 'scoped memory for bert_head_forward.1']
    #allocation5 [shape = 'u8[49152]{0}', space=vmem, size = 0xc000, scoped, tag = 'output window, operand 0, single buffered']
    %8 = vsyncpa [#allocation3], 0
    %9 = vsyncpa [#allocation4], 0
    // Predicated region
    $region2: #{bert_head_forward.1} parent=1 // pred_check
      _
    $region3: #{bert_head_forward.1} parent=1 // pred_check_branch
      %11 = sbr.rel (0) target = $region5
    $region4: #{bert_head_forward.1} parent=1 // pred_region
      _
    $region5: #{bert_head_forward.1} parent=1 // pred_fallthru
      _
    // Predicated region
    $region6: #{bert_head_forward.1} parent=1 // pred_check
      _
    $region7: #{bert_head_forward.1} parent=1 // pred_check_branch
      %13 = sbr.rel (0) target = $region9
    $region8: #{bert_head_forward.1} parent=1 // pred_region
      %s15 = ssub.s32 9216, 9216
      %16 = vsyncadd [#allocation3], %s15
      %s17 = sshll.u32 [#allocation2], 4
      %s18 = int_to_ptr.vmem [resolvable:$true] %s17
      %23 = dma.hbm_to_vmem [thread:$0]  %s1, 9216, %s18, [#allocation3], 768, 768, 48
    $region9: #{bert_head_forward.1} parent=1 // pred_fallthru
      _
    // Predicated region
    $region10: #{bert_head_forward.1} parent=1 // pred_check
      _
    $region11: #{bert_head_forward.1} parent=1 // pred_check_branch
      %25 = sbr.rel (0) target = $region13
    $region12: #{bert_head_forward.1} parent=1 // pred_region
      _
    $region13: #{bert_head_forward.1} parent=1 // pred_fallthru
      _
    // Predicated region
    $region14: #{bert_head_forward.1} parent=1 // pred_check
      _
    $region15: #{bert_head_forward.1} parent=1 // pred_check_branch
      %27 = sbr.rel (0) target = $region17
    $region16: #{bert_head_forward.1} parent=1 // pred_region
      %28 = dma.done [#allocation3], 9216
    $region17: #{bert_head_forward.1} parent=1 // pred_fallthru
      _
    %v30 = vld [vmem:[%s0] sm:$0xff]
    %v31 = vpack.c.bf16 %v30, %v30
    %v32 = vld [vmem:[#allocation2] sm:$0xff]
    %v33 = vld [vmem:[#allocation2 + $0x8] sm:$0xff]
    %v34 = vld [vmem:[#allocation2 + $0x10] sm:$0xff]
    %v35 = vld [vmem:[#allocation2 + $0x18] sm:$0xff]
    %v36 = vld [vmem:[#allocation2 + $0x20] sm:$0xff]
    %v37 = vld [vmem:[#allocation2 + $0x28] sm:$0xff]
    %v38 = vld [vmem:[#allocation2 + $0x30] sm:$0xff]
    %v39 = vld [vmem:[#allocation2 + $0x38] sm:$0xff]
    %v40 = vld [vmem:[#allocation2 + $0x40] sm:$0xff]
    %v41 = vld [vmem:[#allocation2 + $0x48] sm:$0xff]
    %v42 = vld [vmem:[#allocation2 + $0x50] sm:$0xff]
    %v43 = vld [vmem:[#allocation2 + $0x58] sm:$0xff]
    %v44 = vld [vmem:[#allocation2 + $0x60] sm:$0xff]
    %v45 = vld [vmem:[#allocation2 + $0x68] sm:$0xff]
    %v46 = vld [vmem:[#allocation2 + $0x70] sm:$0xff]
    %v47 = vld [vmem:[#allocation2 + $0x78] sm:$0xff]
    %v48 = vld [vmem:[#allocation2 + $0x80] sm:$0xff]
    %v49 = vld [vmem:[#allocation2 + $0x88] sm:$0xff]
    %v50 = vld [vmem:[#allocation2 + $0x90] sm:$0xff]
    %v51 = vld [vmem:[#allocation2 + $0x98] sm:$0xff]
    %v52 = vld [vmem:[#allocation2 + $0xa0] sm:$0xff]
    %v53 = vld [vmem:[#allocation2 + $0xa8] sm:$0xff]
    %v54 = vld [vmem:[#allocation2 + $0xb0] sm:$0xff]
    %v55 = vld [vmem:[#allocation2 + $0xb8] sm:$0xff]
    %v56 = vld [vmem:[#allocation2 + $0xc0] sm:$0xff]
    %v57 = vld [vmem:[#allocation2 + $0xc8] sm:$0xff]
    %v58 = vld [vmem:[#allocation2 + $0xd0] sm:$0xff]
    %v59 = vld [vmem:[#allocation2 + $0xd8] sm:$0xff]
    %v60 = vld [vmem:[#allocation2 + $0xe0] sm:$0xff]
    %v61 = vld [vmem:[#allocation2 + $0xe8] sm:$0xff]
    %v62 = vld [vmem:[#allocation2 + $0xf0] sm:$0xff]
    %v63 = vld [vmem:[#allocation2 + $0xf8] sm:$0xff]
    %v64 = vld [vmem:[#allocation2 + $0x100] sm:$0xff]
    %v65 = vld [vmem:[#allocation2 + $0x108] sm:$0xff]
    %v66 = vld [vmem:[#allocation2 + $0x110] sm:$0xff]
    %v67 = vld [vmem:[#allocation2 + $0x118] sm:$0xff]
    %v68 = vld [vmem:[#allocation2 + $0x120] sm:$0xff]
    %v69 = vld [vmem:[#allocation2 + $0x128] sm:$0xff]
    %v70 = vld [vmem:[#allocation2 + $0x130] sm:$0xff]
    %v71 = vld [vmem:[#allocation2 + $0x138] sm:$0xff]
    %v72 = vld [vmem:[#allocation2 + $0x140] sm:$0xff]
    %v73 = vld [vmem:[#allocation2 + $0x148] sm:$0xff]
    %v74 = vld [vmem:[#allocation2 + $0x150] sm:$0xff]
    %v75 = vld [vmem:[#allocation2 + $0x158] sm:$0xff]
    %v76 = vld [vmem:[#allocation2 + $0x160] sm:$0xff]
    %v77 = vld [vmem:[#allocation2 + $0x168] sm:$0xff]
    %v78 = vld [vmem:[#allocation2 + $0x170] sm:$0xff]
    %v79 = vld [vmem:[#allocation2 + $0x178] sm:$0xff]
    %v80 = vld [vmem:[#allocation2 + $0x180] sm:$0xff]
    %v81 = vld [vmem:[#allocation2 + $0x188] sm:$0xff]
    %v82 = vld [vmem:[#allocation2 + $0x190] sm:$0xff]
    %v83 = vld [vmem:[#allocation2 + $0x198] sm:$0xff]
    %v84 = vld [vmem:[#allocation2 + $0x1a0] sm:$0xff]
    %v85 = vld [vmem:[#allocation2 + $0x1a8] sm:$0xff]
    %v86 = vld [vmem:[#allocation2 + $0x1b0] sm:$0xff]
    %v87 = vld [vmem:[#allocation2 + $0x1b8] sm:$0xff]
    %v88 = vld [vmem:[#allocation2 + $0x1c0] sm:$0xff]
    %v89 = vld [vmem:[#allocation2 + $0x1c8] sm:$0xff]
    %v90 = vld [vmem:[#allocation2 + $0x1d0] sm:$0xff]
    %v91 = vld [vmem:[#allocation2 + $0x1d8] sm:$0xff]
    %v92 = vld [vmem:[#allocation2 + $0x1e0] sm:$0xff]
    %v93 = vld [vmem:[#allocation2 + $0x1e8] sm:$0xff]
    %v94 = vld [vmem:[#allocation2 + $0x1f0] sm:$0xff]
    %v95 = vld [vmem:[#allocation2 + $0x1f8] sm:$0xff]
    %v96 = vld [vmem:[#allocation2 + $0x200] sm:$0xff]
    %v97 = vld [vmem:[#allocation2 + $0x208] sm:$0xff]
    %v98 = vld [vmem:[#allocation2 + $0x210] sm:$0xff]
    %v99 = vld [vmem:[#allocation2 + $0x218] sm:$0xff]
    %v100 = vld [vmem:[#allocation2 + $0x220] sm:$0xff]
    %v101 = vld [vmem:[#allocation2 + $0x228] sm:$0xff]
    %v102 = vld [vmem:[#allocation2 + $0x230] sm:$0xff]
    %v103 = vld [vmem:[#allocation2 + $0x238] sm:$0xff]
    %v104 = vld [vmem:[%s2] sm:$0xff]
    %v105 = vld [vmem:[%s2 + $0x8] sm:$0xf]
    %v108 = vlaneseq
    %v109 = vshrl.u32 %v108, 7
    %v110 = vsub.s32 0, %v109
    %v111 = vrot.slane %v104, %v110
    %v112 = vlaneseq
    %v113 = vshrl.u32 %v112, 7
    %v114 = vsub.s32 1, %v113
    %v115 = vrot.slane %v104, %v114
    %v116 = vlaneseq
    %v117 = vshrl.u32 %v116, 7
    %v118 = vsub.s32 2, %v117
    %v119 = vrot.slane %v104, %v118
    %v120 = vlaneseq
    %v121 = vshrl.u32 %v120, 7
    %v122 = vsub.s32 3, %v121
    %v123 = vrot.slane %v104, %v122
    %v124 = vlaneseq
    %v125 = vshrl.u32 %v124, 7
    %v126 = vsub.s32 4, %v125
    %v127 = vrot.slane %v104, %v126
    %v128 = vlaneseq
    %v129 = vshrl.u32 %v128, 7
    %v130 = vsub.s32 5, %v129
    %v131 = vrot.slane %v104, %v130
    %v132 = vlaneseq
    %v133 = vshrl.u32 %v132, 7
    %v134 = vsub.s32 6, %v133
    %v135 = vrot.slane %v104, %v134
    %v136 = vlaneseq
    %v137 = vshrl.u32 %v136, 7
    %v138 = vsub.s32 7, %v137
    %v139 = vrot.slane %v104, %v138
    %v140 = vlaneseq
    %v141 = vshrl.u32 %v140, 7
    %v142 = vsub.s32 0, %v141
    %v143 = vrot.slane %v105, %v142
    %v144 = vlaneseq
    %v145 = vshrl.u32 %v144, 7
    %v146 = vsub.s32 1, %v145
    %v147 = vrot.slane %v105, %v146
    %v148 = vlaneseq
    %v149 = vshrl.u32 %v148, 7
    %v150 = vsub.s32 2, %v149
    %v151 = vrot.slane %v105, %v150
    %v152 = vlaneseq
    %v153 = vshrl.u32 %v152, 7
    %v154 = vsub.s32 3, %v153
    %v155 = vrot.slane %v105, %v154
    %v240 = vunpack.c.l.b16 %v32
    %v241 = vunpack.c.h.b16 %v32
    %v242 = vunpack.c.l.b16 %v33
    %v243 = vunpack.c.h.b16 %v33
    %v244 = vunpack.c.l.b16 %v34
    %v245 = vunpack.c.h.b16 %v34
    %v246 = vunpack.c.l.b16 %v35
    %v247 = vunpack.c.h.b16 %v35
    %v248 = vunpack.c.l.b16 %v36
    %v249 = vunpack.c.h.b16 %v36
    %v250 = vunpack.c.l.b16 %v37
    %v251 = vunpack.c.h.b16 %v37
    %v252 = vunpack.c.l.b16 %v38
    %v253 = vunpack.c.h.b16 %v38
    %v254 = vunpack.c.l.b16 %v39
    %v255 = vunpack.c.h.b16 %v39
    %v256 = vunpack.c.l.b16 %v40
    %v257 = vunpack.c.h.b16 %v40
    %v258 = vunpack.c.l.b16 %v41
    %v259 = vunpack.c.h.b16 %v41
    %v260 = vunpack.c.l.b16 %v42
    %v261 = vunpack.c.h.b16 %v42
    %v262 = vunpack.c.l.b16 %v43
    %v263 = vunpack.c.h.b16 %v43
    %v264 = vunpack.c.l.b16 %v44
    %v265 = vunpack.c.h.b16 %v44
    %v266 = vunpack.c.l.b16 %v45
    %v267 = vunpack.c.h.b16 %v45
    %v268 = vunpack.c.l.b16 %v46
    %v269 = vunpack.c.h.b16 %v46
    %v270 = vunpack.c.l.b16 %v47
    %v271 = vunpack.c.h.b16 %v47
    %v272 = vunpack.c.l.b16 %v48
    %v273 = vunpack.c.h.b16 %v48
    %v274 = vunpack.c.l.b16 %v49
    %v275 = vunpack.c.h.b16 %v49
    %v276 = vunpack.c.l.b16 %v50
    %v277 = vunpack.c.h.b16 %v50
    %v278 = vunpack.c.l.b16 %v51
    %v279 = vunpack.c.h.b16 %v51
    %v280 = vunpack.c.l.b16 %v52
    %v281 = vunpack.c.h.b16 %v52
    %v282 = vunpack.c.l.b16 %v53
    %v283 = vunpack.c.h.b16 %v53
    %v284 = vunpack.c.l.b16 %v54
    %v285 = vunpack.c.h.b16 %v54
    %v286 = vunpack.c.l.b16 %v55
    %v287 = vunpack.c.h.b16 %v55
    %v288 = vunpack.c.l.b16 %v56
    %v289 = vunpack.c.h.b16 %v56
    %v290 = vunpack.c.l.b16 %v57
    %v291 = vunpack.c.h.b16 %v57
    %v292 = vunpack.c.l.b16 %v58
    %v293 = vunpack.c.h.b16 %v58
    %v294 = vunpack.c.l.b16 %v59
    %v295 = vunpack.c.h.b16 %v59
    %v296 = vunpack.c.l.b16 %v60
    %v297 = vunpack.c.h.b16 %v60
    %v298 = vunpack.c.l.b16 %v61
    %v299 = vunpack.c.h.b16 %v61
    %v300 = vunpack.c.l.b16 %v62
    %v301 = vunpack.c.h.b16 %v62
    %v302 = vunpack.c.l.b16 %v63
    %v303 = vunpack.c.h.b16 %v63
    %v304 = vunpack.c.l.b16 %v64
    %v305 = vunpack.c.h.b16 %v64
    %v306 = vunpack.c.l.b16 %v65
    %v307 = vunpack.c.h.b16 %v65
    %v308 = vunpack.c.l.b16 %v66
    %v309 = vunpack.c.h.b16 %v66
    %v310 = vunpack.c.l.b16 %v67
    %v311 = vunpack.c.h.b16 %v67
    %v312 = vunpack.c.l.b16 %v68
    %v313 = vunpack.c.h.b16 %v68
    %v314 = vunpack.c.l.b16 %v69
    %v315 = vunpack.c.h.b16 %v69
    %v316 = vunpack.c.l.b16 %v70
    %v317 = vunpack.c.h.b16 %v70
    %v318 = vunpack.c.l.b16 %v71
    %v319 = vunpack.c.h.b16 %v71
    %v320 = vunpack.c.l.b16 %v72
    %v321 = vunpack.c.h.b16 %v72
    %v322 = vunpack.c.l.b16 %v73
    %v323 = vunpack.c.h.b16 %v73
    %v324 = vunpack.c.l.b16 %v74
    %v325 = vunpack.c.h.b16 %v74
    %v326 = vunpack.c.l.b16 %v75
    %v327 = vunpack.c.h.b16 %v75
    %v328 = vunpack.c.l.b16 %v76
    %v329 = vunpack.c.h.b16 %v76
    %v330 = vunpack.c.l.b16 %v77
    %v331 = vunpack.c.h.b16 %v77
    %v332 = vunpack.c.l.b16 %v78
    %v333 = vunpack.c.h.b16 %v78
    %v334 = vunpack.c.l.b16 %v79
    %v335 = vunpack.c.h.b16 %v79
    %v336 = vunpack.c.l.b16 %v80
    %v337 = vunpack.c.h.b16 %v80
    %v338 = vunpack.c.l.b16 %v81
    %v339 = vunpack.c.h.b16 %v81
    %v340 = vunpack.c.l.b16 %v82
    %v341 = vunpack.c.h.b16 %v82
    %v342 = vunpack.c.l.b16 %v83
    %v343 = vunpack.c.h.b16 %v83
    %v344 = vunpack.c.l.b16 %v84
    %v345 = vunpack.c.h.b16 %v84
    %v346 = vunpack.c.l.b16 %v85
    %v347 = vunpack.c.h.b16 %v85
    %v348 = vunpack.c.l.b16 %v86
    %v349 = vunpack.c.h.b16 %v86
    %v350 = vunpack.c.l.b16 %v87
    %v351 = vunpack.c.h.b16 %v87
    %v352 = vunpack.c.l.b16 %v88
    %v353 = vunpack.c.h.b16 %v88
    %v354 = vunpack.c.l.b16 %v89
    %v355 = vunpack.c.h.b16 %v89
    %v356 = vunpack.c.l.b16 %v90
    %v357 = vunpack.c.h.b16 %v90
    %v358 = vunpack.c.l.b16 %v91
    %v359 = vunpack.c.h.b16 %v91
    %v360 = vunpack.c.l.b16 %v92
    %v361 = vunpack.c.h.b16 %v92
    %v362 = vunpack.c.l.b16 %v93
    %v363 = vunpack.c.h.b16 %v93
    %v364 = vunpack.c.l.b16 %v94
    %v365 = vunpack.c.h.b16 %v94
    %v366 = vunpack.c.l.b16 %v95
    %v367 = vunpack.c.h.b16 %v95
    %v368 = vunpack.c.l.b16 %v96
    %v369 = vunpack.c.h.b16 %v96
    %v370 = vunpack.c.l.b16 %v97
    %v371 = vunpack.c.h.b16 %v97
    %v372 = vunpack.c.l.b16 %v98
    %v373 = vunpack.c.h.b16 %v98
    %v374 = vunpack.c.l.b16 %v99
    %v375 = vunpack.c.h.b16 %v99
    %v376 = vunpack.c.l.b16 %v100
    %v377 = vunpack.c.h.b16 %v100
    %v378 = vunpack.c.l.b16 %v101
    %v379 = vunpack.c.h.b16 %v101
    %v380 = vunpack.c.l.b16 %v102
    %v381 = vunpack.c.h.b16 %v102
    %v382 = vunpack.c.l.b16 %v103
    %v383 = vunpack.c.h.b16 %v103
    %v384 = vpack.c.b16 %v252, %v240
    %v385 = vpack.c.b16 %v253, %v241
    %v386 = vpack.c.b16 %v254, %v242
    %v387 = vpack.c.b16 %v255, %v243
    %v388 = vpack.c.b16 %v256, %v244
    %v389 = vpack.c.b16 %v257, %v245
    %v390 = vpack.c.b16 %v258, %v246
    %v391 = vpack.c.b16 %v259, %v247
    %v392 = vpack.c.b16 %v260, %v248
    %v393 = vpack.c.b16 %v261, %v249
    %v394 = vpack.c.b16 %v262, %v250
    %v395 = vpack.c.b16 %v263, %v251
    %v396 = vpack.c.b16 %v276, %v264
    %v397 = vpack.c.b16 %v277, %v265
    %v398 = vpack.c.b16 %v278, %v266
    %v399 = vpack.c.b16 %v279, %v267
    %v400 = vpack.c.b16 %v280, %v268
    %v401 = vpack.c.b16 %v281, %v269
    %v402 = vpack.c.b16 %v282, %v270
    %v403 = vpack.c.b16 %v283, %v271
    %v404 = vpack.c.b16 %v284, %v272
    %v405 = vpack.c.b16 %v285, %v273
    %v406 = vpack.c.b16 %v286, %v274
    %v407 = vpack.c.b16 %v287, %v275
    %v408 = vpack.c.b16 %v300, %v288
    %v409 = vpack.c.b16 %v301, %v289
    %v410 = vpack.c.b16 %v302, %v290
    %v411 = vpack.c.b16 %v303, %v291
    %v412 = vpack.c.b16 %v304, %v292
    %v413 = vpack.c.b16 %v305, %v293
    %v414 = vpack.c.b16 %v306, %v294
    %v415 = vpack.c.b16 %v307, %v295
    %v416 = vpack.c.b16 %v308, %v296
    %v417 = vpack.c.b16 %v309, %v297
    %v418 = vpack.c.b16 %v310, %v298
    %v419 = vpack.c.b16 %v311, %v299
    %v420 = vpack.c.b16 %v324, %v312
    %v421 = vpack.c.b16 %v325, %v313
    %v422 = vpack.c.b16 %v326, %v314
    %v423 = vpack.c.b16 %v327, %v315
    %v424 = vpack.c.b16 %v328, %v316
    %v425 = vpack.c.b16 %v329, %v317
    %v426 = vpack.c.b16 %v330, %v318
    %v427 = vpack.c.b16 %v331, %v319
    %v428 = vpack.c.b16 %v332, %v320
    %v429 = vpack.c.b16 %v333, %v321
    %v430 = vpack.c.b16 %v334, %v322
    %v431 = vpack.c.b16 %v335, %v323
    %v432 = vpack.c.b16 %v348, %v336
    %v433 = vpack.c.b16 %v349, %v337
    %v434 = vpack.c.b16 %v350, %v338
    %v435 = vpack.c.b16 %v351, %v339
    %v436 = vpack.c.b16 %v352, %v340
    %v437 = vpack.c.b16 %v353, %v341
    %v438 = vpack.c.b16 %v354, %v342
    %v439 = vpack.c.b16 %v355, %v343
    %v440 = vpack.c.b16 %v356, %v344
    %v441 = vpack.c.b16 %v357, %v345
    %v442 = vpack.c.b16 %v358, %v346
    %v443 = vpack.c.b16 %v359, %v347
    %v444 = vpack.c.b16 %v372, %v360
    %v445 = vpack.c.b16 %v373, %v361
    %v446 = vpack.c.b16 %v374, %v362
    %v447 = vpack.c.b16 %v375, %v363
    %v448 = vpack.c.b16 %v376, %v364
    %v449 = vpack.c.b16 %v377, %v365
    %v450 = vpack.c.b16 %v378, %v366
    %v451 = vpack.c.b16 %v379, %v367
    %v452 = vpack.c.b16 %v380, %v368
    %v453 = vpack.c.b16 %v381, %v369
    %v454 = vpack.c.b16 %v382, %v370
    %v455 = vpack.c.b16 %v383, %v371
    %vm528 = vcmask 785408
    %v530 = vsel %vm528, %v31, 0
    %532 = vmatprep.subr.bf16.mxu0 %v385
    %533 = vmatpush1.bf16.msra.mxu0 %v384
    %534 = vmatprep.subr.bf16.mxu0 %v397
    %535 = vmatpush1.bf16.msra.mxu0 %v396
    %536 = vmatprep.subr.bf16.mxu0 %v409
    %537 = vmatpush1.bf16.msra.mxu0 %v408
    %538 = vmatprep.subr.bf16.mxu0 %v421
    %539 = vmatpush1.bf16.msra.mxu0 %v420
    %540 = vmatprep.subr.bf16.mxu0 %v433
    %541 = vmatpush1.bf16.msra.mxu0 %v432
    %542 = vmatprep.subr.bf16.mxu0 %v445
    %543 = vmatpush1.bf16.msra.mxu0 %v444
    %544 = vmatprep.subr.bf16.mxu0 0
    %545 = vmatpush1.bf16.msra.mxu0 0
    %546 = vmatprep.subr.bf16.mxu0 0
    %547 = vmatpush1.bf16.msra.mxu0 0
    %548 = vmatprep.subr.bf16.mxu0 0
    %549 = vmatpush1.bf16.msra.mxu0 0
    %550 = vmatprep.subr.bf16.mxu0 0
    %551 = vmatpush1.bf16.msra.mxu0 0
    %552 = vmatprep.subr.bf16.mxu0 0
    %553 = vmatpush1.bf16.msra.mxu0 0
    %554 = vmatprep.subr.bf16.mxu0 0
    %555 = vmatpush1.bf16.msra.mxu0 0
    %556 = vmatprep.subr.bf16.mxu0 0
    %557 = vmatpush1.bf16.msra.mxu0 0
    %558 = vmatprep.subr.bf16.mxu0 0
    %559 = vmatpush1.bf16.msra.mxu0 0
    %560 = vmatprep.subr.bf16.mxu0 0
    %561 = vmatpush1.bf16.msra.mxu0 0
    %562 = vmatprep.subr.bf16.mxu0 0
    %563 = vmatpush1.bf16.msra.mxu0 0
    %564 = vmatprep.mubr.bf16.mxu0 0
    %565 = vmatmul.mubr.bf16.gmra.mrb[0].mxu0 %v530
    %v566 = vpop.f32.mrb[0].mxu0
    %v567 = vadd.f32 %v111, %v566
    %v568 = vpop.f32.mrb[0].mxu0
    %v569 = vadd.f32 %v115, %v568
    %v570 = vpop.f32.mrb[0].mxu0
    %v571 = vpop.f32.mrb[0].mxu0
    %572 = vdwg.mxu0
    %573 = vmatprep.subr.bf16.mxu0 %v387
    %574 = vmatpush1.bf16.msra.mxu0 %v386
    %575 = vmatprep.subr.bf16.mxu0 %v399
    %576 = vmatpush1.bf16.msra.mxu0 %v398
    %577 = vmatprep.subr.bf16.mxu0 %v411
    %578 = vmatpush1.bf16.msra.mxu0 %v410
    %579 = vmatprep.subr.bf16.mxu0 %v423
    %580 = vmatpush1.bf16.msra.mxu0 %v422
    %581 = vmatprep.subr.bf16.mxu0 %v435
    %582 = vmatpush1.bf16.msra.mxu0 %v434
    %583 = vmatprep.subr.bf16.mxu0 %v447
    %584 = vmatpush1.bf16.msra.mxu0 %v446
    %585 = vmatprep.subr.bf16.mxu0 0
    %586 = vmatpush1.bf16.msra.mxu0 0
    %587 = vmatprep.subr.bf16.mxu0 0
    %588 = vmatpush1.bf16.msra.mxu0 0
    %589 = vmatprep.subr.bf16.mxu0 0
    %590 = vmatpush1.bf16.msra.mxu0 0
    %591 = vmatprep.subr.bf16.mxu0 0
    %592 = vmatpush1.bf16.msra.mxu0 0
    %593 = vmatprep.subr.bf16.mxu0 0
    %594 = vmatpush1.bf16.msra.mxu0 0
    %595 = vmatprep.subr.bf16.mxu0 0
    %596 = vmatpush1.bf16.msra.mxu0 0
    %597 = vmatprep.subr.bf16.mxu0 0
    %598 = vmatpush1.bf16.msra.mxu0 0
    %599 = vmatprep.subr.bf16.mxu0 0
    %600 = vmatpush1.bf16.msra.mxu0 0
    %601 = vmatprep.subr.bf16.mxu0 0
    %602 = vmatpush1.bf16.msra.mxu0 0
    %603 = vmatprep.subr.bf16.mxu0 0
    %604 = vmatpush1.bf16.msra.mxu0 0
    %605 = vmatprep.mubr.bf16.mxu0 0
    %606 = vmatmul.mubr.bf16.gmra.mrb[0].mxu0 %v530
    %v607 = vpop.f32.mrb[0].mxu0
    %v608 = vadd.f32 %v119, %v607
    %v609 = vpop.f32.mrb[0].mxu0
    %v610 = vadd.f32 %v123, %v609
    %v611 = vpop.f32.mrb[0].mxu0
    %v612 = vpop.f32.mrb[0].mxu0
    %613 = vdwg.mxu0
    %614 = vmatprep.subr.bf16.mxu0 %v389
    %615 = vmatpush1.bf16.msra.mxu0 %v388
    %616 = vmatprep.subr.bf16.mxu0 %v401
    %617 = vmatpush1.bf16.msra.mxu0 %v400
    %618 = vmatprep.subr.bf16.mxu0 %v413
    %619 = vmatpush1.bf16.msra.mxu0 %v412
    %620 = vmatprep.subr.bf16.mxu0 %v425
    %621 = vmatpush1.bf16.msra.mxu0 %v424
    %622 = vmatprep.subr.bf16.mxu0 %v437
    %623 = vmatpush1.bf16.msra.mxu0 %v436
    %624 = vmatprep.subr.bf16.mxu0 %v449
    %625 = vmatpush1.bf16.msra.mxu0 %v448
    %626 = vmatprep.subr.bf16.mxu0 0
    %627 = vmatpush1.bf16.msra.mxu0 0
    %628 = vmatprep.subr.bf16.mxu0 0
    %629 = vmatpush1.bf16.msra.mxu0 0
    %630 = vmatprep.subr.bf16.mxu0 0
    %631 = vmatpush1.bf16.msra.mxu0 0
    %632 = vmatprep.subr.bf16.mxu0 0
    %633 = vmatpush1.bf16.msra.mxu0 0
    %634 = vmatprep.subr.bf16.mxu0 0
    %635 = vmatpush1.bf16.msra.mxu0 0
    %636 = vmatprep.subr.bf16.mxu0 0
    %637 = vmatpush1.bf16.msra.mxu0 0
    %638 = vmatprep.subr.bf16.mxu0 0
    %639 = vmatpush1.bf16.msra.mxu0 0
    %640 = vmatprep.subr.bf16.mxu0 0
    %641 = vmatpush1.bf16.msra.mxu0 0
    %642 = vmatprep.subr.bf16.mxu0 0
    %643 = vmatpush1.bf16.msra.mxu0 0
    %644 = vmatprep.subr.bf16.mxu0 0
    %645 = vmatpush1.bf16.msra.mxu0 0
    %646 = vmatprep.mubr.bf16.mxu0 0
    %647 = vmatmul.mubr.bf16.gmra.mrb[0].mxu0 %v530
    %v648 = vpop.f32.mrb[0].mxu0
    %v649 = vadd.f32 %v127, %v648
    %v650 = vpop.f32.mrb[0].mxu0
    %v651 = vadd.f32 %v131, %v650
    %v652 = vpop.f32.mrb[0].mxu0
    %v653 = vpop.f32.mrb[0].mxu0
    %654 = vdwg.mxu0
    %655 = vmatprep.subr.bf16.mxu0 %v391
    %656 = vmatpush1.bf16.msra.mxu0 %v390
    %657 = vmatprep.subr.bf16.mxu0 %v403
    %658 = vmatpush1.bf16.msra.mxu0 %v402
    %659 = vmatprep.subr.bf16.mxu0 %v415
    %660 = vmatpush1.bf16.msra.mxu0 %v414
    %661 = vmatprep.subr.bf16.mxu0 %v427
    %662 = vmatpush1.bf16.msra.mxu0 %v426
    %663 = vmatprep.subr.bf16.mxu0 %v439
    %664 = vmatpush1.bf16.msra.mxu0 %v438
    %665 = vmatprep.subr.bf16.mxu0 %v451
    %666 = vmatpush1.bf16.msra.mxu0 %v450
    %667 = vmatprep.subr.bf16.mxu0 0
    %668 = vmatpush1.bf16.msra.mxu0 0
    %669 = vmatprep.subr.bf16.mxu0 0
    %670 = vmatpush1.bf16.msra.mxu0 0
    %671 = vmatprep.subr.bf16.mxu0 0
    %672 = vmatpush1.bf16.msra.mxu0 0
    %673 = vmatprep.subr.bf16.mxu0 0
    %674 = vmatpush1.bf16.msra.mxu0 0
    %675 = vmatprep.subr.bf16.mxu0 0
    %676 = vmatpush1.bf16.msra.mxu0 0
    %677 = vmatprep.subr.bf16.mxu0 0
    %678 = vmatpush1.bf16.msra.mxu0 0
    %679 = vmatprep.subr.bf16.mxu0 0
    %680 = vmatpush1.bf16.msra.mxu0 0
    %681 = vmatprep.subr.bf16.mxu0 0
    %682 = vmatpush1.bf16.msra.mxu0 0
    %683 = vmatprep.subr.bf16.mxu0 0
    %684 = vmatpush1.bf16.msra.mxu0 0
    %685 = vmatprep.subr.bf16.mxu0 0
    %686 = vmatpush1.bf16.msra.mxu0 0
    %687 = vmatprep.mubr.bf16.mxu0 0
    %688 = vmatmul.mubr.bf16.gmra.mrb[0].mxu0 %v530
    %v689 = vpop.f32.mrb[0].mxu0
    %v690 = vadd.f32 %v135, %v689
    %v691 = vpop.f32.mrb[0].mxu0
    %v692 = vadd.f32 %v139, %v691
    %v693 = vpop.f32.mrb[0].mxu0
    %v694 = vpop.f32.mrb[0].mxu0
    %695 = vdwg.mxu0
    %696 = vmatprep.subr.bf16.mxu0 %v393
    %697 = vmatpush1.bf16.msra.mxu0 %v392
    %698 = vmatprep.subr.bf16.mxu0 %v405
    %699 = vmatpush1.bf16.msra.mxu0 %v404
    %700 = vmatprep.subr.bf16.mxu0 %v417
    %701 = vmatpush1.bf16.msra.mxu0 %v416
    %702 = vmatprep.subr.bf16.mxu0 %v429
    %703 = vmatpush1.bf16.msra.mxu0 %v428
    %704 = vmatprep.subr.bf16.mxu0 %v441
    %705 = vmatpush1.bf16.msra.mxu0 %v440
    %706 = vmatprep.subr.bf16.mxu0 %v453
    %707 = vmatpush1.bf16.msra.mxu0 %v452
    %708 = vmatprep.subr.bf16.mxu0 0
    %709 = vmatpush1.bf16.msra.mxu0 0
    %710 = vmatprep.subr.bf16.mxu0 0
    %711 = vmatpush1.bf16.msra.mxu0 0
    %712 = vmatprep.subr.bf16.mxu0 0
    %713 = vmatpush1.bf16.msra.mxu0 0
    %714 = vmatprep.subr.bf16.mxu0 0
    %715 = vmatpush1.bf16.msra.mxu0 0
    %716 = vmatprep.subr.bf16.mxu0 0
    %717 = vmatpush1.bf16.msra.mxu0 0
    %718 = vmatprep.subr.bf16.mxu0 0
    %719 = vmatpush1.bf16.msra.mxu0 0
    %720 = vmatprep.subr.bf16.mxu0 0
    %721 = vmatpush1.bf16.msra.mxu0 0
    %722 = vmatprep.subr.bf16.mxu0 0
    %723 = vmatpush1.bf16.msra.mxu0 0
    %724 = vmatprep.subr.bf16.mxu0 0
    %725 = vmatpush1.bf16.msra.mxu0 0
    %726 = vmatprep.subr.bf16.mxu0 0
    %727 = vmatpush1.bf16.msra.mxu0 0
    %728 = vmatprep.mubr.bf16.mxu0 0
    %729 = vmatmul.mubr.bf16.gmra.mrb[0].mxu0 %v530
    %v730 = vpop.f32.mrb[0].mxu0
    %v731 = vadd.f32 %v143, %v730
    %v732 = vpop.f32.mrb[0].mxu0
    %v733 = vadd.f32 %v147, %v732
    %v734 = vpop.f32.mrb[0].mxu0
    %v735 = vpop.f32.mrb[0].mxu0
    %736 = vdwg.mxu0
    %737 = vmatprep.subr.bf16.mxu0 %v395
    %738 = vmatpush1.bf16.msra.mxu0 %v394
    %739 = vmatprep.subr.bf16.mxu0 %v407
    %740 = vmatpush1.bf16.msra.mxu0 %v406
    %741 = vmatprep.subr.bf16.mxu0 %v419
    %742 = vmatpush1.bf16.msra.mxu0 %v418
    %743 = vmatprep.subr.bf16.mxu0 %v431
    %744 = vmatpush1.bf16.msra.mxu0 %v430
    %745 = vmatprep.subr.bf16.mxu0 %v443
    %746 = vmatpush1.bf16.msra.mxu0 %v442
    %747 = vmatprep.subr.bf16.mxu0 %v455
    %748 = vmatpush1.bf16.msra.mxu0 %v454
    %749 = vmatprep.subr.bf16.mxu0 0
    %750 = vmatpush1.bf16.msra.mxu0 0
    %751 = vmatprep.subr.bf16.mxu0 0
    %752 = vmatpush1.bf16.msra.mxu0 0
    %753 = vmatprep.subr.bf16.mxu0 0
    %754 = vmatpush1.bf16.msra.mxu0 0
    %755 = vmatprep.subr.bf16.mxu0 0
    %756 = vmatpush1.bf16.msra.mxu0 0
    %757 = vmatprep.subr.bf16.mxu0 0
    %758 = vmatpush1.bf16.msra.mxu0 0
    %759 = vmatprep.subr.bf16.mxu0 0
    %760 = vmatpush1.bf16.msra.mxu0 0
    %761 = vmatprep.subr.bf16.mxu0 0
    %762 = vmatpush1.bf16.msra.mxu0 0
    %763 = vmatprep.subr.bf16.mxu0 0
    %764 = vmatpush1.bf16.msra.mxu0 0
    %765 = vmatprep.subr.bf16.mxu0 0
    %766 = vmatpush1.bf16.msra.mxu0 0
    %767 = vmatprep.subr.bf16.mxu0 0
    %768 = vmatpush1.bf16.msra.mxu0 0
    %769 = vmatprep.mubr.bf16.mxu0 0
    %770 = vmatmul.mubr.bf16.gmra.mrb[0].mxu0 %v530
    %v771 = vpop.f32.mrb[0].mxu0
    %v772 = vadd.f32 %v151, %v771
    %v773 = vpop.f32.mrb[0].mxu0
    %v774 = vadd.f32 %v155, %v773
    %v775 = vpop.f32.mrb[0].mxu0
    %v776 = vpop.f32.mrb[0].mxu0
    %777 = vdwg.mxu0
    %v778 = vmax.f32 %v567, 0.0
    %v779 = vmax.f32 %v569, 0.0
    %v780 = vmax.f32 %v608, 0.0
    %v781 = vmax.f32 %v610, 0.0
    %v782 = vmax.f32 %v649, 0.0
    %v783 = vmax.f32 %v651, 0.0
    %v784 = vmax.f32 %v690, 0.0
    %v785 = vmax.f32 %v692, 0.0
    %v786 = vmax.f32 %v731, 0.0
    %v787 = vmax.f32 %v733, 0.0
    %v788 = vmax.f32 %v772, 0.0
    %v789 = vmax.f32 %v774, 0.0
    %790 = vst [vmem:[#allocation5] sm:$0xff] %v778
    %791 = vst [vmem:[#allocation5 + $0x8] sm:$0xff] %v779
    %792 = vst [vmem:[#allocation5 + $0x10] sm:$0xff] %v780
    %793 = vst [vmem:[#allocation5 + $0x18] sm:$0xff] %v781
    %794 = vst [vmem:[#allocation5 + $0x20] sm:$0xff] %v782
    %795 = vst [vmem:[#allocation5 + $0x28] sm:$0xff] %v783
    %796 = vst [vmem:[#allocation5 + $0x30] sm:$0xff] %v784
    %797 = vst [vmem:[#allocation5 + $0x38] sm:$0xff] %v785
    %798 = vst [vmem:[#allocation5 + $0x40] sm:$0xff] %v786
    %799 = vst [vmem:[#allocation5 + $0x48] sm:$0xff] %v787
    %800 = vst [vmem:[#allocation5 + $0x50] sm:$0xff] %v788
    %801 = vst [vmem:[#allocation5 + $0x58] sm:$0xff] %v789
    // Predicated region
    $region18: #{bert_head_forward.1} parent=1 // pred_check
      _
    $region19: #{bert_head_forward.1} parent=1 // pred_check_branch
      %803 = sbr.rel (0) target = $region21
    $region20: #{bert_head_forward.1} parent=1 // pred_region
      %s805 = ssub.s32 1536, 1536
      %806 = vsyncadd [#allocation4], %s805
      %s808 = sshll.u32 [#allocation5], 4
      %s809 = int_to_ptr.vmem [resolvable:$true] %s808
      %811 = dma.vmem_to_hbm [thread:$0]  %s809, 1536, %s3, [#allocation4]
    $region21: #{bert_head_forward.1} parent=1 // pred_fallthru
      _
    // Predicated region
    $region22: #{bert_head_forward.1} parent=1 // pred_check
      _
    $region23: #{bert_head_forward.1} parent=1 // pred_check_branch
      %813 = sbr.rel (0) target = $region25
    $region24: #{bert_head_forward.1} parent=1 // pred_region
      %814 = dma.done [#allocation4], 1536
    $region25: #{bert_head_forward.1} parent=1 // pred_fallthru
      _
    %815 = vsyncpa [#allocation3], 1
    %816 = vsyncpa [#allocation4], 1

</llo_original>
